<compile_context>
chip_gen: v6e
topology: v6e:2x2x1
jax: 0.10.0
libtpu: 0.0.40
codegen_flags: <defaults>
</compile_context>

<pallas_src>
import functools

import jax
import jax.numpy as jnp
from jax.experimental import pallas as pl
from jax.experimental.pallas import tpu as pltpu

_LANE = 1024                      # 8 sublanes * 128 lanes -> unmasked, full-lane vst/DMA
_SMALL_FASTPATH_BYTES = 1 << 20   # below this, a plain XLA copy beats kernel launch cost


def _copy_kernel(x_ref, o_ref):
    # Elementwise pass-through on one VMEM tile (2-D or 1-D ref).
    o_ref[...] = x_ref[...]


@functools.lru_cache(maxsize=1)
def _tile_config():
    """Per-generation (tile_bytes, vmem_limit_bytes).

    v7x: 8 MiB buffers (in+out double-buffered = 32 MiB, within 64 MiB VMEM),
         raise the scoped-VMEM limit to 48 MiB.
    v5e/v6e (and unknown): 4 MiB buffers — double-buffered in+out is 16 MiB,
         exactly v5e's default scoped-VMEM limit; no measurable BW gain from
         going larger there (copy is already HBM-roofline-bound).
    """
    tile_bytes = 4 * 1024 * 1024
    vmem_limit = None
    try:
        kind = jax.devices()[0].device_kind.lower()
    except Exception:  # pragma: no cover - defensive; default tiling is safe everywhere
        kind = ""
    if "v7" in kind:
        tile_bytes = 8 * 1024 * 1024
        vmem_limit = 48 << 20
    return tile_bytes, vmem_limit


def _pallas_copy_2d(x2d, tile_rows, vmem_limit, total_bytes):
    rows, cols = x2d.shape
    grid = (pl.cdiv(rows, tile_rows),)
    return pl.pallas_call(
        _copy_kernel,
        out_shape=jax.ShapeDtypeStruct((rows, cols), x2d.dtype),
        grid_spec=pltpu.PrefetchScalarGridSpec(
            num_scalar_prefetch=0,
            grid=grid,
            in_specs=[pl.BlockSpec((tile_rows, cols), lambda i: (i, 0))],
            out_specs=pl.BlockSpec((tile_rows, cols), lambda i: (i, 0)),
        ),
        compiler_params=pltpu.CompilerParams(
            # Tiles are independent -> shard across TensorCores on v7x,
            # neutral on single-TC v5e/v6e.
            dimension_semantics=("parallel",),
            vmem_limit_bytes=vmem_limit,
        ),
        # Pure memory traffic: 0 flops, read N + write N bytes.
        cost_estimate=pl.CostEstimate(
            flops=0, transcendentals=0, bytes_accessed=2 * total_bytes),
    )(x2d)


def _pallas_copy_1d(x1d, chunk, vmem_limit, total_bytes):
    (n,) = x1d.shape
    grid = (pl.cdiv(n, chunk),)
    return pl.pallas_call(
        _copy_kernel,
        out_shape=jax.ShapeDtypeStruct((n,), x1d.dtype),
        grid_spec=pltpu.PrefetchScalarGridSpec(
            num_scalar_prefetch=0,
            grid=grid,
            in_specs=[pl.BlockSpec((chunk,), lambda i: (i,))],
            out_specs=pl.BlockSpec((chunk,), lambda i: (i,)),
        ),
        compiler_params=pltpu.CompilerParams(
            dimension_semantics=("parallel",),
            vmem_limit_bytes=vmem_limit,
        ),
        cost_estimate=pl.CostEstimate(
            flops=0, transcendentals=0, bytes_accessed=2 * total_bytes),
    )(x1d)


def identity_copy(x, *, force_pallas=False):
    """Materialized identity copy via a single-pass, tiled Pallas kernel.

    Exactly one HBM read + one HBM write of the payload: no pad, no slice,
    no concatenate around the kernel.
    """
    orig_shape = x.shape
    dtype = x.dtype
    total = int(x.size)

    # Zero-size guard (avoids a degenerate 0-row grid).
    if total == 0:
        return jnp.copy(x)

    itemsize = max(1, jnp.dtype(dtype).itemsize)
    total_bytes = total * itemsize

    # Small-input fast path: the pallas_call launch + plumbing dwarfs the
    # 2N-byte copy; a plain XLA copy is already at the roofline.
    if not force_pallas and total_bytes < _SMALL_FASTPATH_BYTES:
        return jnp.copy(x)

    tile_bytes, vmem_limit = _tile_config()
    flat = x.reshape(-1)  # contiguous reshape: metadata-only, no HBM traffic

    if total % _LANE == 0:
        # Common case: pure-metadata reshape to a lane-dense (rows, 1024) slab.
        rows = total // _LANE
        # Rows per tile: multiple of 8 (sublane), capped at tile_bytes per buffer.
        max_tr = max(8, (tile_bytes // (_LANE * itemsize)) // 8 * 8)
        if rows <= max_tr:
            # Single block covering the full row dim (full-dim escape hatch of
            # the (8,128) rule); still lane-dense on the last dim.
            tile_rows = rows
        else:
            # cdiv grid; a partial final row-block is masked by Pallas, so no
            # row padding of the whole slab is ever materialized.
            tile_rows = max_tr
        out2d = _pallas_copy_2d(flat.reshape(rows, _LANE), tile_rows,
                                vmem_limit, total_bytes)
        return out2d.reshape(orig_shape)

    # Ragged case (total not a multiple of 1024): single 1-D pass with a masked
    # final block — still no pad / slice / concat.
    chunk_elems = max(_LANE, (tile_bytes // itemsize) // _LANE * _LANE)
    chunk = total if total <= chunk_elems else chunk_elems
    out1d = _pallas_copy_1d(flat, chunk, vmem_limit, total_bytes)
    return out1d.reshape(orig_shape)


def identity_first_stage_forward(x, *args, materialize=False, **kwargs):
    """IdentityFirstStage.forward: returns x.

    Zero-copy by default (the identity op has zero required work; the returned
    array aliases the input — document this for callers that later donate the
    buffer).  Set materialize=True to force a fresh buffer via the Pallas copy.
    """
    if materialize:
        return identity_copy(x)
    return x


def identity_first_stage_encode(x, *args, **kwargs):
    return identity_first_stage_forward(x, *args, **kwargs)


def identity_first_stage_decode(x, *args, **kwargs):
    return identity_first_stage_forward(x, *args, **kwargs)


def identity_first_stage_quantize(x, *args, vq_interface=False, **kwargs):
    if vq_interface:
        return (x, None, [None, None, None])
    return x


# IdentityFirstStage has no parameters, so there is nothing to initialize.

if __name__ == "__main__":
    key = jax.random.PRNGKey(0)
    # Small NCHW input consistent with a first-stage autoencoder interface.
    x = jax.random.normal(key, (2, 4, 16, 16), dtype=jnp.float32)

    # 1) Default zero-copy identity path (the actual forward semantics).
    y = identity_first_stage_forward(x)
    y = jax.block_until_ready(y)
    assert y.shape == x.shape and y.dtype == x.dtype
    assert bool(jnp.all(y == x))

    # 2) Pallas kernel, aligned path (total % 1024 == 0 -> 2-D lane-dense slab).
    y_copy = identity_copy(x, force_pallas=True)
    y_copy = jax.block_until_ready(y_copy)
    assert y_copy.shape == x.shape and y_copy.dtype == x.dtype
    assert bool(jnp.all(y_copy == x))

    # 3) Pallas kernel, ragged path (element count not a multiple of 1024):
    #    single 1-D call with a full-dim block, no padding anywhere.
    x_odd = jax.random.normal(jax.random.PRNGKey(1), (2, 3, 7, 5),
                              dtype=jnp.float32)
    y_odd = identity_copy(x_odd, force_pallas=True)
    y_odd = jax.block_until_ready(y_odd)
    assert y_odd.shape == x_odd.shape and bool(jnp.all(y_odd == x_odd))

    # 4) Small-input fast path of the materialize wrapper (plain XLA copy).
    y_fast = identity_first_stage_forward(x, materialize=True)
    y_fast = jax.block_until_ready(y_fast)
    assert bool(jnp.all(y_fast == x))

    # 5) vq_interface tuple glue (pure Python, no kernel).
    yq, _, extras = identity_first_stage_quantize(x, vq_interface=True)
    jax.block_until_ready(yq)
    assert bool(jnp.all(yq == x)) and extras == [None, None, None]

    print("KERNEL_OK")
</pallas_src>

<mosaic_0001>
module attributes {stable_mosaic.version = 11 : i64} {
  func.func @_copy_kernel(%arg0: i32, %arg1: memref<2x1024xf32, #tpu.memory_space<vmem>>, %arg2: memref<2x1024xf32, #tpu.memory_space<vmem>>) attributes {dimension_semantics = [#tpu.dimension_semantics<parallel>], iteration_bounds = array<i64: 1>, scalar_prefetch = 0 : i64, scratch_operands = 0 : i64, tpu.core_type = #tpu.core_type<tc>, window_params = [{transform_indices = @transform_0, window_bounds = array<i64: 2, 1024>}, {transform_indices = @transform_1, window_bounds = array<i64: 2, 1024>}]} {
    %c0 = arith.constant 0 : index
    %c0_0 = arith.constant 0 : index
    %0 = vector.load %arg1[%c0, %c0_0] : memref<2x1024xf32, #tpu.memory_space<vmem>>, vector<2x1024xf32>
    %c0_1 = arith.constant 0 : index
    %c0_2 = arith.constant 0 : index
    %1 = vector.load %arg2[%c0_1, %c0_2] : memref<2x1024xf32, #tpu.memory_space<vmem>>, vector<2x1024xf32>
    tpu.vector_store %arg2[%c0_1, %c0_2], %0 {strides = array<i32>} : memref<2x1024xf32, #tpu.memory_space<vmem>>, vector<2x1024xf32>,
    return
  }
  func.func @transform_0(%arg0: i32) -> (i32, i32) {
    %c0_i32 = arith.constant 0 : i32
    %c0_i32_0 = arith.constant 0 : i32
    return %arg0, %c0_i32 : i32, i32
  }
  func.func @transform_1(%arg0: i32) -> (i32, i32) {
    %c0_i32 = arith.constant 0 : i32
    %c0_i32_0 = arith.constant 0 : i32
    return %arg0, %c0_i32 : i32, i32
  }
}

</mosaic_0001>

<llo_original>
// kernel: tpu_custom_call.1
$region0: #{tpu_custom_call.1}
  #allocation0 [shape = 'u32[]', space=smem, size = 0x4, offset = 0x4, fixed_abs, tag = 'smem constant byte address 0x4 - core index']
  #allocation1 [shape = 'u32[144,128]{1,0:T(1,128)}', space=vmem, size = 0x12000, scoped, tag = 'internal scratch']
  %s0 = inlined_call_operand.hbm [shape: f32[2,1024], index: 0, kind: input, shape index: {}]
  %s1 = inlined_call_operand.hbm [shape: f32[2,1024], index: 1, kind: output, shape index: {}]
  %s2 = sld [smem:[#allocation0]]
  $region18: #{tpu_custom_call.1} parent=0
    _
  %s4 = ssub.s32 1, %s2
  %s5 = scalar_select 0, %s4, %s2
  $region1: #{tpu_custom_call.1} parent=0
    #allocation2 [shape = 'u8[8192]{0}', space=vmem, size = 0x2000, scoped, tag = 'input window, operand 0, single buffered']
    #allocation3 [shape = 's32[1]{0}', space=sflag, size = 0x4, scoped, tag = 'scoped memory for tpu_custom_call.1']
    #allocation4 [shape = 's32[1]{0}', space=sflag, size = 0x4, scoped, tag = 'scoped memory for tpu_custom_call.1']
    #allocation5 [shape = 'u8[8192]{0}', space=vmem, size = 0x2000, scoped, tag = 'output window, operand 0, single buffered']
    %6 = vsyncpa [#allocation3], 0
    %7 = vsyncpa [#allocation4], 0
    // Predicated region
    $region2: #{tpu_custom_call.1} parent=1 // pred_check
      _
    $region3: #{tpu_custom_call.1} parent=1 // pred_check_branch
      %9 = sbr.rel (0) target = $region5
    $region4: #{tpu_custom_call.1} parent=1 // pred_region
      %s11 = ssub.s32 256, 256
      %12 = vsyncadd [#allocation3], %s11
      %s14 = sshll.u32 [#allocation2], 4
      %s15 = int_to_ptr.vmem [resolvable:$true] %s14
      %17 = dma.hbm_to_vmem [thread:$0]  %s0, 256, %s15, [#allocation3]
    $region5: #{tpu_custom_call.1} parent=1 // pred_fallthru
      _
    // Predicated region
    $region6: #{tpu_custom_call.1} parent=1 // pred_check
      _
    $region7: #{tpu_custom_call.1} parent=1 // pred_check_branch
      %19 = sbr.rel (0) target = $region9
    $region8: #{tpu_custom_call.1} parent=1 // pred_region
      %20 = dma.done [#allocation3], 256
    $region9: #{tpu_custom_call.1} parent=1 // pred_fallthru
      _
    %v21 = vld [vmem:[#allocation2] sm:$0xff]
    %v22 = vld [vmem:[#allocation2 + $0x8] sm:$0xff]
    %23 = vst [vmem:[#allocation5] sm:$0xff] %v21
    %24 = vst [vmem:[#allocation5 + $0x8] sm:$0xff] %v22
    // Predicated region
    $region10: #{tpu_custom_call.1} parent=1 // pred_check
      _
    $region11: #{tpu_custom_call.1} parent=1 // pred_check_branch
      %26 = sbr.rel (0) target = $region13
    $region12: #{tpu_custom_call.1} parent=1 // pred_region
      %s28 = ssub.s32 256, 256
      %29 = vsyncadd [#allocation4], %s28
      %s31 = sshll.u32 [#allocation5], 4
      %s32 = int_to_ptr.vmem [resolvable:$true] %s31
      %34 = dma.vmem_to_hbm [thread:$0]  %s32, 256, %s1, [#allocation4]
    $region13: #{tpu_custom_call.1} parent=1 // pred_fallthru
      _
    // Predicated region
    $region14: #{tpu_custom_call.1} parent=1 // pred_check
      _
    $region15: #{tpu_custom_call.1} parent=1 // pred_check_branch
      %36 = sbr.rel (0) target = $region17
    $region16: #{tpu_custom_call.1} parent=1 // pred_region
      %37 = dma.done [#allocation4], 256
    $region17: #{tpu_custom_call.1} parent=1 // pred_fallthru
      _
    %38 = vsyncpa [#allocation3], 1
    %39 = vsyncpa [#allocation4], 1

</llo_original>
